<compile_context>
chip_gen: v5e
topology: v5e:2x2
jax: 0.10.0
libtpu: 0.0.40
codegen_flags: <defaults>
</compile_context>

<pallas_src>
import functools
import math

import jax
import jax.numpy as jnp
from jax import lax
from jax.experimental import pallas as pl
from jax.experimental.pallas import tpu as pltpu


def _round_up(x, m):
    return ((x + m - 1) // m) * m


def _cdiv(a, b):
    return -(-a // b)


def _dclw_lse_kernel(shift_ref, row_ref, colt_ref, out_ref, l_sc, *,
                     blk_r, blk_c, two_n, m_pad):
    """Per-row sum of exp(logit - shift) over one (blk_r, blk_c) logit tile per step.

    shift_ref : (1,) f32 in SMEM, upper bound on every logit (cosine: 1/T,
                dot: max_k ||x_k||^2 of the pre-scaled rows).
    l_sc      : (blk_r, 128) f32 lane-dense partial-sum accumulator.
    """
    r = pl.program_id(0)
    c = pl.program_id(1)
    n_col = pl.num_programs(1)
    n_chunks = blk_c // 128

    @pl.when(c == 0)
    def _init():
        l_sc[...] = jnp.zeros_like(l_sc)

    shift = shift_ref[0]

    # Rows pre-scaled by 1/sqrt(T) (and normalized in cosine mode); col operand is
    # a pre-transposed copy -> plain (M,K)x(K,N) contraction emitting sim/T.
    logits = jnp.dot(row_ref[...], colt_ref[...],
                     preferred_element_type=jnp.float32)
    p = jnp.exp(logits - shift)            # shift >= max logit -> no overflow

    # Lane-dense partial sums: 128-wide VPU adds only, no cross-lane reduce here.
    acc = l_sc[...]
    for k in range(n_chunks):
        acc = acc + p[:, k * 128:(k + 1) * 128]
    l_sc[...] = acc

    # The logsumexp excludes j == i: subtract diagonal terms, only on tiles whose
    # row/col ranges actually intersect the diagonal.
    @pl.when(jnp.logical_and(r * blk_r < (c + 1) * blk_c,
                             c * blk_c < (r + 1) * blk_r))
    def _drop_diag():
        rid = r * blk_r + lax.broadcasted_iota(jnp.int32, (blk_r, blk_c), 0)
        cid = c * blk_c + lax.broadcasted_iota(jnp.int32, (blk_r, blk_c), 1)
        diag_p = jnp.where(rid == cid, p, 0.0)
        a = l_sc[...]
        for k in range(n_chunks):
            a = a - diag_p[:, k * 128:(k + 1) * 128]
        l_sc[...] = a

    # Zero-padded columns dot to logit 0 -> exp(-shift); subtract them, only on
    # column blocks overlapping the padded range [two_n, m_pad).
    if m_pad > two_n:
        @pl.when((c + 1) * blk_c > two_n)
        def _drop_pad():
            cid = c * blk_c + lax.broadcasted_iota(jnp.int32, (blk_r, blk_c), 1)
            pad_p = jnp.where(cid >= two_n, p, 0.0)
            a = l_sc[...]
            for k in range(n_chunks):
                a = a - pad_p[:, k * 128:(k + 1) * 128]
            l_sc[...] = a

    @pl.when(c == n_col - 1)
    def _finalize():
        row_sum = jnp.sum(l_sc[...], axis=-1, keepdims=True)      # (blk_r, 1)
        out_ref[...] = jnp.log(row_sum) + shift                   # per-row logsumexp


def dclw_forward(zis, zjs, position=None, step=0, epoch=0, path=None, *,
                 batch_size, temperature, use_cosine_similarity=True,
                 block_rows=768, block_cols=256, mxu_dtype=jnp.bfloat16):
    """Pallas implementation of DCLW.forward (the returned loss)."""
    # TODO(synk): topk=0 in the reference makes the w_matrix / topk / scatter /
    # plotting branch dead w.r.t. the returned loss, so position/step/epoch/path
    # are accepted for interface parity but unused.
    del position, step, epoch, path

    n, d = zis.shape
    assert zjs.shape == (n, d) and n == batch_size
    two_n = 2 * n

    # ---- O(2N*D) prep on the XLA side ----------------------------------------
    inv_sqrt_t = 1.0 / math.sqrt(float(temperature))
    zis32 = zis.astype(jnp.float32)
    zjs32 = zjs.astype(jnp.float32)
    if use_cosine_similarity:
        def _scale(x):
            sq = jnp.sum(x * x, axis=-1, keepdims=True)
            # per-row clamp; matches torch eps=1e-8 for non-degenerate rows.
            return x * lax.rsqrt(jnp.maximum(sq, jnp.float32(1e-16))) * inv_sqrt_t
    else:
        def _scale(x):
            return x * inv_sqrt_t
    zis_s, zjs_s = _scale(zis32), _scale(zjs32)

    # bf16 MXU operands by default (even for f32 inputs); all softmax math is f32.
    reps_mm = jnp.concatenate([zjs_s, zis_s], axis=0).astype(mxu_dtype)  # row i
    part_mm = jnp.concatenate([zis_s, zjs_s], axis=0).astype(mxu_dtype)  # partner(i)
    reps_f32 = reps_mm.astype(jnp.float32)

    # Positive logit per row, computed in the wrapper from the same dtype-rounded
    # rows the MXU sees (no partner stream in the kernel).
    pos = jnp.sum(reps_f32 * part_mm.astype(jnp.float32), axis=-1)       # (2N,)

    # Constant shift bounding every logit (replaces the per-row running max).
    #   cosine: |logits| <= 1/T.   dot: <x_i,x_j> <= max_k ||x_k||^2 (pre-scaled).
    # NOTE: with a constant shift, rows whose whole logit range sits ~88 below the
    # bound underflow to 0 (as a per-row-max logsumexp also would at that range).
    if use_cosine_similarity:
        shift = jnp.full((1,), 1.0 / float(temperature), dtype=jnp.float32)
    else:
        shift = jnp.max(jnp.sum(reps_f32 * reps_f32, axis=-1)).reshape(1)

    # ---- tiling / padding ------------------------------------------------------
    block_rows = max(128, _round_up(int(block_rows), 128))
    block_cols = max(128, _round_up(int(block_cols), 128))
    n_r = _cdiv(two_n, block_rows)
    blk_r = _round_up(_cdiv(two_n, n_r), 128)
    m_pad = n_r * blk_r
    # column block: largest multiple of 128 dividing blk_r that is <= block_cols.
    q = blk_r // 128
    dd = min(block_cols // 128, q)
    while q % dd:
        dd -= 1
    blk_c = 128 * dd
    n_c = m_pad // blk_c
    d_pad = _round_up(max(d, 128), 128)
    # TODO(synk): the feature axis is a single K block; very large D would need K tiling.

    reps_pad = jnp.pad(reps_mm, ((0, m_pad - two_n), (0, d_pad - d)))
    reps_t = reps_pad.T          # (d_pad, m_pad) pre-transposed column operand

    kernel = functools.partial(_dclw_lse_kernel, blk_r=blk_r, blk_c=blk_c,
                               two_n=two_n, m_pad=m_pad)

    lse = pl.pallas_call(
        kernel,
        out_shape=jax.ShapeDtypeStruct((m_pad, 1), jnp.float32),
        grid_spec=pltpu.PrefetchScalarGridSpec(
            num_scalar_prefetch=0,
            grid=(n_r, n_c),
            in_specs=[
                pl.BlockSpec(memory_space=pltpu.MemorySpace.SMEM),     # shift (1,)
                pl.BlockSpec((blk_r, d_pad), lambda r, c: (r, 0)),     # row tile (resident over c)
                pl.BlockSpec((d_pad, blk_c), lambda r, c: (0, c)),     # streamed col tile
            ],
            out_specs=pl.BlockSpec((blk_r, 1), lambda r, c: (r, 0)),
            scratch_shapes=[pltpu.VMEM((blk_r, 128), jnp.float32)],    # lane-dense exp-sums
        ),
        compiler_params=pltpu.CompilerParams(
            dimension_semantics=("parallel", "arbitrary"),
            # above v5e's 16 MiB scoped default; below v7x's 64 MiB physical VMEM.
            vmem_limit_bytes=48 * 1024 * 1024),
    )(shift, reps_pad, reps_t)

    lse = lse[:two_n, 0]
    return jnp.sum(lse - pos) / jnp.float32(two_n)


def _dclw_reference_jax(zis, zjs, batch_size, temperature, use_cosine):
    """Plain-JAX reference mirroring the PyTorch control flow (for sanity)."""
    reps = jnp.concatenate([zjs, zis], axis=0).astype(jnp.float32)
    if use_cosine:
        nrm = jnp.linalg.norm(reps, axis=-1, keepdims=True)
        sim = (reps @ reps.T) / jnp.maximum(nrm * nrm.T, 1e-8)
    else:
        sim = reps @ reps.T
    two_n = 2 * batch_size
    row = jnp.arange(two_n)[:, None]
    col = jnp.arange(two_n)[None, :]
    pos_mask = (col == row + batch_size) | (col == row - batch_size)
    diag = col == row
    logits = sim / temperature
    masked = jnp.where(diag, -jnp.inf, logits)
    lse = jax.scipy.special.logsumexp(masked, axis=-1)
    pos = jnp.sum(jnp.where(pos_mask, logits, 0.0), axis=-1)
    return jnp.mean(lse - pos)


if __name__ == "__main__":
    N = 8          # batch_size
    D = 32         # feature dim

    key = jax.random.PRNGKey(0)
    k1, k2, k3 = jax.random.split(key, 3)
    zis = jax.random.normal(k1, (N, D), dtype=jnp.float32)
    zjs = jax.random.normal(k2, (N, D), dtype=jnp.float32)
    position = jax.random.uniform(k3, (N, 3), dtype=jnp.float32) * 100.0

    cases = [
        # (use_cosine, temperature, mxu_dtype, rtol, atol)
        (True,  0.5, jnp.float32,  1e-3, 1e-5),   # exact-ish path
        (True,  0.5, jnp.bfloat16, 1e-2, 1e-2),   # default fast path
        (False, 5.0, jnp.float32,  1e-3, 1e-4),   # dot-similarity path
        (False, 5.0, jnp.bfloat16, 1e-2, 2e-2),
    ]
    for use_cos, temp, mmdt, rtol, atol in cases:
        loss = dclw_forward(zis, zjs, position,
                            batch_size=N, temperature=temp,
                            use_cosine_similarity=use_cos, mxu_dtype=mmdt)
        loss = jax.block_until_ready(loss)
        ref = _dclw_reference_jax(zis, zjs, N, temp, use_cosine=use_cos)
        assert jnp.isfinite(loss), (use_cos, temp, mmdt, float(loss))
        assert jnp.allclose(loss, ref, rtol=rtol, atol=atol), \
            (use_cos, temp, mmdt, float(loss), float(ref))

    print("KERNEL_OK")
</pallas_src>

<mosaic_0001>
module attributes {stable_mosaic.version = 11 : i64} {
  func.func @_dclw_lse_kernel(%arg0: i32, %arg1: i32, %arg2: memref<1xf32, #tpu.memory_space<smem>>, %arg3: memref<128x128xf32, #tpu.memory_space<vmem>>, %arg4: memref<128x128xf32, #tpu.memory_space<vmem>>, %arg5: memref<128x1xf32, #tpu.memory_space<vmem>>, %arg6: memref<128x128xf32, #tpu.memory_space<vmem>>) attributes {dimension_semantics = [#tpu.dimension_semantics<parallel>, #tpu.dimension_semantics<arbitrary>], iteration_bounds = array<i64: 1, 1>, scalar_prefetch = 0 : i64, scratch_operands = 1 : i64, tpu.core_type = #tpu.core_type<tc>, window_params = [{transform_indices = @transform_0, window_bounds = array<i64: 1>}, {transform_indices = @transform_1, window_bounds = array<i64: 128, 128>}, {transform_indices = @transform_2, window_bounds = array<i64: 128, 128>}, {transform_indices = @transform_3, window_bounds = array<i64: 128, 1>}]} {
    %c0_i32 = arith.constant 0 : i32
    %0 = arith.cmpi eq, %arg1, %c0_i32 : i32
    %1 = arith.extui %0 : i1 to i32
    %c0_i32_0 = arith.constant 0 : i32
    %2 = arith.cmpi ne, %1, %c0_i32_0 : i32
    scf.if %2 {
      %cst_19 = arith.constant 0.000000e+00 : f32
      %32 = vector.broadcast %cst_19 : f32 to vector<128x128xf32>
      %c0_20 = arith.constant 0 : index
      %c0_21 = arith.constant 0 : index
      %33 = vector.load %arg6[%c0_20, %c0_21] : memref<128x128xf32, #tpu.memory_space<vmem>>, vector<128x128xf32>
      tpu.vector_store %arg6[%c0_20, %c0_21], %32 {strides = array<i32>} : memref<128x128xf32, #tpu.memory_space<vmem>>, vector<128x128xf32>,
    } else {
    }
    %c0 = arith.constant 0 : index
    %3 = memref.load %arg2[%c0] : memref<1xf32, #tpu.memory_space<smem>>
    %c0_1 = arith.constant 0 : index
    %c0_2 = arith.constant 0 : index
    %4 = vector.load %arg3[%c0_1, %c0_2] : memref<128x128xf32, #tpu.memory_space<vmem>>, vector<128x128xf32>
    %c0_3 = arith.constant 0 : index
    %c0_4 = arith.constant 0 : index
    %5 = vector.load %arg4[%c0_3, %c0_4] : memref<128x128xf32, #tpu.memory_space<vmem>>, vector<128x128xf32>
    %cst = arith.constant dense<0.000000e+00> : vector<128x128xf32>
    %6 = tpu.matmul %4, %5, %cst {dimension_numbers = #tpu.dot_dimension_numbers<[1], [0], [0], [1], [0, 0, 1, 1], [], []>} : vector<128x128xf32>, vector<128x128xf32>, vector<128x128xf32> -> vector<128x128xf32>
    %7 = vector.broadcast %3 : f32 to vector<128x128xf32>
    %8 = arith.subf %6, %7 : vector<128x128xf32>
    %9 = math.exp %8 : vector<128x128xf32>
    %c0_5 = arith.constant 0 : index
    %c0_6 = arith.constant 0 : index
    %10 = vector.load %arg6[%c0_5, %c0_6] : memref<128x128xf32, #tpu.memory_space<vmem>>, vector<128x128xf32>
    %11 = arith.addf %10, %9 : vector<128x128xf32>
    %c0_7 = arith.constant 0 : index
    %c0_8 = arith.constant 0 : index
    %12 = vector.load %arg6[%c0_7, %c0_8] : memref<128x128xf32, #tpu.memory_space<vmem>>, vector<128x128xf32>
    tpu.vector_store %arg6[%c0_7, %c0_8], %11 {strides = array<i32>} : memref<128x128xf32, #tpu.memory_space<vmem>>, vector<128x128xf32>,
    %c128_i32 = arith.constant 128 : i32
    %13 = arith.muli %arg0, %c128_i32 : i32
    %c1_i32 = arith.constant 1 : i32
    %14 = arith.addi %arg1, %c1_i32 : i32
    %c128_i32_9 = arith.constant 128 : i32
    %15 = arith.muli %14, %c128_i32_9 : i32
    %16 = arith.cmpi slt, %13, %15 : i32
    %c128_i32_10 = arith.constant 128 : i32
    %17 = arith.muli %arg1, %c128_i32_10 : i32
    %c1_i32_11 = arith.constant 1 : i32
    %18 = arith.addi %arg0, %c1_i32_11 : i32
    %c128_i32_12 = arith.constant 128 : i32
    %19 = arith.muli %18, %c128_i32_12 : i32
    %20 = arith.cmpi slt, %17, %19 : i32
    %21 = arith.andi %16, %20 : i1
    %22 = arith.extui %21 : i1 to i32
    %c0_i32_13 = arith.constant 0 : i32
    %23 = arith.cmpi ne, %22, %c0_i32_13 : i32
    scf.if %23 {
      %c128_i32_19 = arith.constant 128 : i32
      %32 = arith.muli %arg0, %c128_i32_19 : i32
      %33 = tpu.iota {dimensions = array<i32: 0>} : vector<128x128xi32>
      %34 = vector.broadcast %32 : i32 to vector<128x128xi32>
      %35 = arith.addi %34, %33 : vector<128x128xi32>
      %c128_i32_20 = arith.constant 128 : i32
      %36 = arith.muli %arg1, %c128_i32_20 : i32
      %37 = tpu.iota {dimensions = array<i32: 1>} : vector<128x128xi32>
      %38 = vector.broadcast %36 : i32 to vector<128x128xi32>
      %39 = arith.addi %38, %37 : vector<128x128xi32>
      %40 = arith.cmpi eq, %35, %39 : vector<128x128xi32>
      %cst_21 = arith.constant 0.000000e+00 : f32
      %41 = vector.broadcast %cst_21 : f32 to vector<128x128xf32>
      %42 = arith.select %40, %9, %41 : vector<128x128xi1>, vector<128x128xf32>
      %c0_22 = arith.constant 0 : index
      %c0_23 = arith.constant 0 : index
      %43 = vector.load %arg6[%c0_22, %c0_23] : memref<128x128xf32, #tpu.memory_space<vmem>>, vector<128x128xf32>
      %44 = arith.subf %43, %42 : vector<128x128xf32>
      %c0_24 = arith.constant 0 : index
      %c0_25 = arith.constant 0 : index
      %45 = vector.load %arg6[%c0_24, %c0_25] : memref<128x128xf32, #tpu.memory_space<vmem>>, vector<128x128xf32>
      tpu.vector_store %arg6[%c0_24, %c0_25], %44 {strides = array<i32>} : memref<128x128xf32, #tpu.memory_space<vmem>>, vector<128x128xf32>,
    } else {
    }
    %c1_i32_14 = arith.constant 1 : i32
    %24 = arith.addi %arg1, %c1_i32_14 : i32
    %c128_i32_15 = arith.constant 128 : i32
    %25 = arith.muli %24, %c128_i32_15 : i32
    %c16_i32 = arith.constant 16 : i32
    %26 = arith.cmpi sgt, %25, %c16_i32 : i32
    %27 = arith.extui %26 : i1 to i32
    %c0_i32_16 = arith.constant 0 : i32
    %28 = arith.cmpi ne, %27, %c0_i32_16 : i32
    scf.if %28 {
      %c128_i32_19 = arith.constant 128 : i32
      %32 = arith.muli %arg1, %c128_i32_19 : i32
      %33 = tpu.iota {dimensions = array<i32: 1>} : vector<128x128xi32>
      %34 = vector.broadcast %32 : i32 to vector<128x128xi32>
      %35 = arith.addi %34, %33 : vector<128x128xi32>
      %c16_i32_20 = arith.constant 16 : i32
      %36 = vector.broadcast %c16_i32_20 : i32 to vector<128x128xi32>
      %37 = arith.cmpi sge, %35, %36 : vector<128x128xi32>
      %cst_21 = arith.constant 0.000000e+00 : f32
      %38 = vector.broadcast %cst_21 : f32 to vector<128x128xf32>
      %39 = arith.select %37, %9, %38 : vector<128x128xi1>, vector<128x128xf32>
      %c0_22 = arith.constant 0 : index
      %c0_23 = arith.constant 0 : index
      %40 = vector.load %arg6[%c0_22, %c0_23] : memref<128x128xf32, #tpu.memory_space<vmem>>, vector<128x128xf32>
      %41 = arith.subf %40, %39 : vector<128x128xf32>
      %c0_24 = arith.constant 0 : index
      %c0_25 = arith.constant 0 : index
      %42 = vector.load %arg6[%c0_24, %c0_25] : memref<128x128xf32, #tpu.memory_space<vmem>>, vector<128x128xf32>
      tpu.vector_store %arg6[%c0_24, %c0_25], %41 {strides = array<i32>} : memref<128x128xf32, #tpu.memory_space<vmem>>, vector<128x128xf32>,
    } else {
    }
    %c0_i32_17 = arith.constant 0 : i32
    %29 = arith.cmpi eq, %arg1, %c0_i32_17 : i32
    %30 = arith.extui %29 : i1 to i32
    %c0_i32_18 = arith.constant 0 : i32
    %31 = arith.cmpi ne, %30, %c0_i32_18 : i32
    scf.if %31 {
      %c0_19 = arith.constant 0 : index
      %c0_20 = arith.constant 0 : index
      %32 = vector.load %arg6[%c0_19, %c0_20] : memref<128x128xf32, #tpu.memory_space<vmem>>, vector<128x128xf32>
      %cst_21 = arith.constant dense<0.000000e+00> : vector<128xf32>
      %33 = vector.multi_reduction <add>, %32, %cst_21 [1] : vector<128x128xf32> to vector<128xf32>
      %34 = vector.shape_cast %33 : vector<128xf32> to vector<128x1xf32>
      %35 = math.log %34 : vector<128x1xf32>
      %36 = vector.broadcast %3 : f32 to vector<128x1xf32>
      %37 = arith.addf %35, %36 : vector<128x1xf32>
      %c0_22 = arith.constant 0 : index
      %c0_23 = arith.constant 0 : index
      %38 = vector.load %arg5[%c0_22, %c0_23] : memref<128x1xf32, #tpu.memory_space<vmem>>, vector<128x1xf32>
      tpu.vector_store %arg5[%c0_22, %c0_23], %37 {strides = array<i32>} : memref<128x1xf32, #tpu.memory_space<vmem>>, vector<128x1xf32>,
    } else {
    }
    return
  }
  func.func @transform_0(%arg0: i32, %arg1: i32) -> i32 {
    %c0_i32 = arith.constant 0 : i32
    %c0_i32_0 = arith.constant 0 : i32
    return %c0_i32 : i32
  }
  func.func @transform_1(%arg0: i32, %arg1: i32) -> (i32, i32) {
    %c0_i32 = arith.constant 0 : i32
    %c0_i32_0 = arith.constant 0 : i32
    return %arg0, %c0_i32 : i32, i32
  }
  func.func @transform_2(%arg0: i32, %arg1: i32) -> (i32, i32) {
    %c0_i32 = arith.constant 0 : i32
    %c0_i32_0 = arith.constant 0 : i32
    return %c0_i32, %arg1 : i32, i32
  }
  func.func @transform_3(%arg0: i32, %arg1: i32) -> (i32, i32) {
    %c0_i32 = arith.constant 0 : i32
    %c0_i32_0 = arith.constant 0 : i32
    return %arg0, %c0_i32 : i32, i32
  }
}

</mosaic_0001>

<llo_original>
// kernel: tpu_custom_call.1
$region0: #{tpu_custom_call.1}
  #allocation0 [shape = 'u32[]', space=smem, size = 0x4, offset = 0x4, fixed_abs, tag = 'smem constant byte address 0x4 - core index']
  #allocation1 [shape = 'u32[72,128]{1,0:T(1,128)}', space=vmem, size = 0x9000, scoped, tag = 'internal scratch']
  #allocation2 [shape = 'f32[128,128]{1,0:T(8,128)}', space=vmem, size = 0x10000, scoped, tag = 'scratch operand']
  #allocation3 [shape = 'f32[1]{0:T(128)S(6)}', space=smem, size = 0x200, scoped, tag = 'scoped memory for tpu_custom_call.1']
  %s0 = inlined_call_operand.<no memory space> [shape: f32[1], index: 0, kind: input, shape index: {}]
  %s1 = inlined_call_operand.hbm [shape: f32[128,128], index: 1, kind: input, shape index: {}]
  %s2 = inlined_call_operand.hbm [shape: f32[128,128], index: 2, kind: input, shape index: {}]
  %s3 = inlined_call_operand.vmem [shape: f32[128,1], index: 3, kind: output, shape index: {}]
  %s4 = sld [smem:[#allocation0]]
  $region46: #{tpu_custom_call.1} parent=0
    _
  %s6 = ssub.s32 1, %s4
  %s7 = scalar_select 0, %s6, %s4
  %8 = sst [smem:[#allocation3]] %s0
  $region1: #{tpu_custom_call.1} parent=0
    #allocation4 [shape = 'u8[65536]{0}', space=vmem, size = 0x10000, scoped, tag = 'input window, operand 1, single buffered']
    #allocation5 [shape = 's32[1]{0}', space=sflag, size = 0x4, scoped, tag = 'scoped memory for tpu_custom_call.1']
    #allocation6 [shape = 'u8[65536]{0}', space=vmem, size = 0x10000, scoped, tag = 'input window, operand 2, single buffered']
    #allocation7 [shape = 's32[1]{0}', space=sflag, size = 0x4, scoped, tag = 'scoped memory for tpu_custom_call.1']
    %9 = vsyncpa [#allocation5], 0
    %10 = vsyncpa [#allocation7], 0
    // Predicated region
    $region2: #{tpu_custom_call.1} parent=1 // pred_check
      _
    $region3: #{tpu_custom_call.1} parent=1 // pred_check_branch
      %12 = sbr.rel (0) target = $region5
    $region4: #{tpu_custom_call.1} parent=1 // pred_region
      _
    $region5: #{tpu_custom_call.1} parent=1 // pred_fallthru
      _
    // Predicated region
    $region6: #{tpu_custom_call.1} parent=1 // pred_check
      _
    $region7: #{tpu_custom_call.1} parent=1 // pred_check_branch
      %14 = sbr.rel (0) target = $region9
    $region8: #{tpu_custom_call.1} parent=1 // pred_region
      %16 = vsyncadd [#allocation5], 0
      %s17 = sshll.u32 %s1, 4
      %s18 = int_to_ptr.hbm [resolvable:$true] %s17
      %s19 = sshll.u32 [#allocation4], 4
      %s20 = int_to_ptr.vmem [resolvable:$true] %s19
      %25 = dma.hbm_to_vmem [thread:$0]  %s18, 2048, %s20, [#allocation5], 128, 128, 8
    $region9: #{tpu_custom_call.1} parent=1 // pred_fallthru
      _
    // Predicated region
    $region10: #{tpu_custom_call.1} parent=1 // pred_check
      _
    $region11: #{tpu_custom_call.1} parent=1 // pred_check_branch
      %27 = sbr.rel (0) target = $region13
    $region12: #{tpu_custom_call.1} parent=1 // pred_region
      %29 = vsyncadd [#allocation7], 0
      %s30 = sshll.u32 %s2, 4
      %s31 = int_to_ptr.hbm [resolvable:$true] %s30
      %s32 = sshll.u32 [#allocation6], 4
      %s33 = int_to_ptr.vmem [resolvable:$true] %s32
      %38 = dma.hbm_to_vmem [thread:$0]  %s31, 2048, %s33, [#allocation7], 128, 128, 8
    $region13: #{tpu_custom_call.1} parent=1 // pred_fallthru
      _
    // Predicated region
    $region14: #{tpu_custom_call.1} parent=1 // pred_check
      _
    $region15: #{tpu_custom_call.1} parent=1 // pred_check_branch
      %40 = sbr.rel (0) target = $region17
    $region16: #{tpu_custom_call.1} parent=1 // pred_region
      %42 = dma.done [#allocation5], 2048
    $region17: #{tpu_custom_call.1} parent=1 // pred_fallthru
      _
    // Predicated region
    $region18: #{tpu_custom_call.1} parent=1 // pred_check
      _
    $region19: #{tpu_custom_call.1} parent=1 // pred_check_branch
      %44 = sbr.rel (0) target = $region21
    $region20: #{tpu_custom_call.1} parent=1 // pred_region
      %46 = dma.done [#allocation7], 2048
    $region21: #{tpu_custom_call.1} parent=1 // pred_fallthru
      _
    %p47 = scmp.eq.s32.totalorder 0, 0
    // Predicated region
    $region22: #{tpu_custom_call.1} parent=1 // pred_check
      %p48 = pneg %p47
    $region23: #{tpu_custom_call.1} parent=1 // pred_check_branch
      %50 = sbr.rel (%p48) target = $region25
    $region24: #{tpu_custom_call.1} parent=1 // pred_region
      %51 = vst [vmem:[#allocation2] sm:$0xff] 0.0
      %52 = vst [vmem:[#allocation2 + $0x8] sm:$0xff] 0.0
      %53 = vst [vmem:[#allocation2 + $0x10] sm:$0xff] 0.0
      %54 = vst [vmem:[#allocation2 + $0x18] sm:$0xff] 0.0
      %55 = vst [vmem:[#allocation2 + $0x20] sm:$0xff] 0.0
      %56 = vst [vmem:[#allocation2 + $0x28] sm:$0xff] 0.0
      %57 = vst [vmem:[#allocation2 + $0x30] sm:$0xff] 0.0
      %58 = vst [vmem:[#allocation2 + $0x38] sm:$0xff] 0.0
      %59 = vst [vmem:[#allocation2 + $0x40] sm:$0xff] 0.0
      %60 = vst [vmem:[#allocation2 + $0x48] sm:$0xff] 0.0
      %61 = vst [vmem:[#allocation2 + $0x50] sm:$0xff] 0.0
      %62 = vst [vmem:[#allocation2 + $0x58] sm:$0xff] 0.0
      %63 = vst [vmem:[#allocation2 + $0x60] sm:$0xff] 0.0
      %64 = vst [vmem:[#allocation2 + $0x68] sm:$0xff] 0.0
      %65 = vst [vmem:[#allocation2 + $0x70] sm:$0xff] 0.0
      %66 = vst [vmem:[#allocation2 + $0x78] sm:$0xff] 0.0
    $region25: #{tpu_custom_call.1} parent=1 // pred_fallthru
      _
    %s67 = sld [smem:[#allocation3]]
    %v68 = vld [vmem:[#allocation4] sm:$0xff]
    %v69 = vld [vmem:[#allocation4 + $0x8] sm:$0xff]
    %v70 = vld [vmem:[#allocation4 + $0x10] sm:$0xff]
    %v71 = vld [vmem:[#allocation4 + $0x18] sm:$0xff]
    %v72 = vld [vmem:[#allocation4 + $0x20] sm:$0xff]
    %v73 = vld [vmem:[#allocation4 + $0x28] sm:$0xff]
    %v74 = vld [vmem:[#allocation4 + $0x30] sm:$0xff]
    %v75 = vld [vmem:[#allocation4 + $0x38] sm:$0xff]
    %v76 = vld [vmem:[#allocation4 + $0x40] sm:$0xff]
    %v77 = vld [vmem:[#allocation4 + $0x48] sm:$0xff]
    %v78 = vld [vmem:[#allocation4 + $0x50] sm:$0xff]
    %v79 = vld [vmem:[#allocation4 + $0x58] sm:$0xff]
    %v80 = vld [vmem:[#allocation4 + $0x60] sm:$0xff]
    %v81 = vld [vmem:[#allocation4 + $0x68] sm:$0xff]
    %v82 = vld [vmem:[#allocation4 + $0x70] sm:$0xff]
    %v83 = vld [vmem:[#allocation4 + $0x78] sm:$0xff]
    %v84 = vld [vmem:[#allocation6] sm:$0xff]
    %v85 = vld [vmem:[#allocation6 + $0x8] sm:$0xff]
    %v86 = vld [vmem:[#allocation6 + $0x10] sm:$0xff]
    %v87 = vld [vmem:[#allocation6 + $0x18] sm:$0xff]
    %v88 = vld [vmem:[#allocation6 + $0x20] sm:$0xff]
    %v89 = vld [vmem:[#allocation6 + $0x28] sm:$0xff]
    %v90 = vld [vmem:[#allocation6 + $0x30] sm:$0xff]
    %v91 = vld [vmem:[#allocation6 + $0x38] sm:$0xff]
    %v92 = vld [vmem:[#allocation6 + $0x40] sm:$0xff]
    %v93 = vld [vmem:[#allocation6 + $0x48] sm:$0xff]
    %v94 = vld [vmem:[#allocation6 + $0x50] sm:$0xff]
    %v95 = vld [vmem:[#allocation6 + $0x58] sm:$0xff]
    %v96 = vld [vmem:[#allocation6 + $0x60] sm:$0xff]
    %v97 = vld [vmem:[#allocation6 + $0x68] sm:$0xff]
    %v98 = vld [vmem:[#allocation6 + $0x70] sm:$0xff]
    %v99 = vld [vmem:[#allocation6 + $0x78] sm:$0xff]
    %100 = vmatpush.msra.mxu0 %v99
    %101 = vmatpush.msra.mxu0 %v98
    %102 = vmatpush.msra.mxu0 %v97
    %103 = vmatpush.msra.mxu0 %v96
    %104 = vmatpush.msra.mxu0 %v95
    %105 = vmatpush.msra.mxu0 %v94
    %106 = vmatpush.msra.mxu0 %v93
    %107 = vmatpush.msra.mxu0 %v92
    %108 = vmatpush.msra.mxu0 %v91
    %109 = vmatpush.msra.mxu0 %v90
    %110 = vmatpush.msra.mxu0 %v89
    %111 = vmatpush.msra.mxu0 %v88
    %112 = vmatpush.msra.mxu0 %v87
    %113 = vmatpush.msra.mxu0 %v86
    %114 = vmatpush.msra.mxu0 %v85
    %115 = vmatpush.msra.mxu0 %v84
    %116 = vmatmul.f32.gmra.mxu0 %v68
    %v117 = vpop.f32.mrf.mxu0
    %v118 = vadd.f32 0.0, %v117
    %119 = vmatmul.f32.gmra.mxu0 %v69
    %v120 = vpop.f32.mrf.mxu0
    %v121 = vadd.f32 0.0, %v120
    %122 = vmatmul.f32.gmra.mxu0 %v70
    %v123 = vpop.f32.mrf.mxu0
    %v124 = vadd.f32 0.0, %v123
    %125 = vmatmul.f32.gmra.mxu0 %v71
    %v126 = vpop.f32.mrf.mxu0
    %v127 = vadd.f32 0.0, %v126
    %128 = vmatmul.f32.gmra.mxu0 %v72
    %v129 = vpop.f32.mrf.mxu0
    %v130 = vadd.f32 0.0, %v129
    %131 = vmatmul.f32.gmra.mxu0 %v73
    %v132 = vpop.f32.mrf.mxu0
    %v133 = vadd.f32 0.0, %v132
    %134 = vmatmul.f32.gmra.mxu0 %v74
    %v135 = vpop.f32.mrf.mxu0
    %v136 = vadd.f32 0.0, %v135
    %137 = vmatmul.f32.gmra.mxu0 %v75
    %v138 = vpop.f32.mrf.mxu0
    %v139 = vadd.f32 0.0, %v138
    %140 = vmatmul.f32.gmra.mxu0 %v76
    %v141 = vpop.f32.mrf.mxu0
    %v142 = vadd.f32 0.0, %v141
    %143 = vmatmul.f32.gmra.mxu0 %v77
    %v144 = vpop.f32.mrf.mxu0
    %v145 = vadd.f32 0.0, %v144
    %146 = vmatmul.f32.gmra.mxu0 %v78
    %v147 = vpop.f32.mrf.mxu0
    %v148 = vadd.f32 0.0, %v147
    %149 = vmatmul.f32.gmra.mxu0 %v79
    %v150 = vpop.f32.mrf.mxu0
    %v151 = vadd.f32 0.0, %v150
    %152 = vmatmul.f32.gmra.mxu0 %v80
    %v153 = vpop.f32.mrf.mxu0
    %v154 = vadd.f32 0.0, %v153
    %155 = vmatmul.f32.gmra.mxu0 %v81
    %v156 = vpop.f32.mrf.mxu0
    %v157 = vadd.f32 0.0, %v156
    %158 = vmatmul.f32.gmra.mxu0 %v82
    %v159 = vpop.f32.mrf.mxu0
    %v160 = vadd.f32 0.0, %v159
    %161 = vmatmul.f32.gmra.mxu0 %v83
    %v162 = vpop.f32.mrf.mxu0
    %v163 = vadd.f32 0.0, %v162
    %164 = vdwg.mxu0
    %v165 = vstv %s67
    %v166 = vsub.f32 %v118, %v165
    %v167 = vsub.f32 %v121, %v165
    %v168 = vsub.f32 %v124, %v165
    %v169 = vsub.f32 %v127, %v165
    %v170 = vsub.f32 %v130, %v165
    %v171 = vsub.f32 %v133, %v165
    %v172 = vsub.f32 %v136, %v165
    %v173 = vsub.f32 %v139, %v165
    %v174 = vsub.f32 %v142, %v165
    %v175 = vsub.f32 %v145, %v165
    %v176 = vsub.f32 %v148, %v165
    %v177 = vsub.f32 %v151, %v165
    %v178 = vsub.f32 %v154, %v165
    %v179 = vsub.f32 %v157, %v165
    %v180 = vsub.f32 %v160, %v165
    %v181 = vsub.f32 %v163, %v165
    %v182 = vmul.f32 %v166, 1.442695
    %v183 = vpow.pop %v182
    %v184 = vmul.f32 %v167, 1.442695
    %v185 = vpow.pop %v184
    %v186 = vmul.f32 %v168, 1.442695
    %v187 = vpow.pop %v186
    %v188 = vmul.f32 %v169, 1.442695
    %v189 = vpow.pop %v188
    %v190 = vmul.f32 %v170, 1.442695
    %v191 = vpow.pop %v190
    %v192 = vmul.f32 %v171, 1.442695
    %v193 = vpow.pop %v192
    %v194 = vmul.f32 %v172, 1.442695
    %v195 = vpow.pop %v194
    %v196 = vmul.f32 %v173, 1.442695
    %v197 = vpow.pop %v196
    %v198 = vmul.f32 %v174, 1.442695
    %v199 = vpow.pop %v198
    %v200 = vmul.f32 %v175, 1.442695
    %v201 = vpow.pop %v200
    %v202 = vmul.f32 %v176, 1.442695
    %v203 = vpow.pop %v202
    %v204 = vmul.f32 %v177, 1.442695
    %v205 = vpow.pop %v204
    %v206 = vmul.f32 %v178, 1.442695
    %v207 = vpow.pop %v206
    %v208 = vmul.f32 %v179, 1.442695
    %v209 = vpow.pop %v208
    %v210 = vmul.f32 %v180, 1.442695
    %v211 = vpow.pop %v210
    %v212 = vmul.f32 %v181, 1.442695
    %v213 = vpow.pop %v212
    %v214 = vld [vmem:[#allocation2] sm:$0xff]
    %v215 = vld [vmem:[#allocation2 + $0x8] sm:$0xff]
    %v216 = vld [vmem:[#allocation2 + $0x10] sm:$0xff]
    %v217 = vld [vmem:[#allocation2 + $0x18] sm:$0xff]
    %v218 = vld [vmem:[#allocation2 + $0x20] sm:$0xff]
    %v219 = vld [vmem:[#allocation2 + $0x28] sm:$0xff]
    %v220 = vld [vmem:[#allocation2 + $0x30] sm:$0xff]
    %v221 = vld [vmem:[#allocation2 + $0x38] sm:$0xff]
    %v222 = vld [vmem:[#allocation2 + $0x40] sm:$0xff]
    %v223 = vld [vmem:[#allocation2 + $0x48] sm:$0xff]
    %v224 = vld [vmem:[#allocation2 + $0x50] sm:$0xff]
    %v225 = vld [vmem:[#allocation2 + $0x58] sm:$0xff]
    %v226 = vld [vmem:[#allocation2 + $0x60] sm:$0xff]
    %v227 = vld [vmem:[#allocation2 + $0x68] sm:$0xff]
    %v228 = vld [vmem:[#allocation2 + $0x70] sm:$0xff]
    %v229 = vld [vmem:[#allocation2 + $0x78] sm:$0xff]
    %v230 = vadd.f32 %v214, %v183
    %v231 = vadd.f32 %v215, %v185
    %v232 = vadd.f32 %v216, %v187
    %v233 = vadd.f32 %v217, %v189
    %v234 = vadd.f32 %v218, %v191
    %v235 = vadd.f32 %v219, %v193
    %v236 = vadd.f32 %v220, %v195
    %v237 = vadd.f32 %v221, %v197
    %v238 = vadd.f32 %v222, %v199
    %v239 = vadd.f32 %v223, %v201
    %v240 = vadd.f32 %v224, %v203
    %v241 = vadd.f32 %v225, %v205
    %v242 = vadd.f32 %v226, %v207
    %v243 = vadd.f32 %v227, %v209
    %v244 = vadd.f32 %v228, %v211
    %v245 = vadd.f32 %v229, %v213
    %246 = vst [vmem:[#allocation2] sm:$0xff] %v230
    %247 = vst [vmem:[#allocation2 + $0x8] sm:$0xff] %v231
    %248 = vst [vmem:[#allocation2 + $0x10] sm:$0xff] %v232
    %249 = vst [vmem:[#allocation2 + $0x18] sm:$0xff] %v233
    %250 = vst [vmem:[#allocation2 + $0x20] sm:$0xff] %v234
    %251 = vst [vmem:[#allocation2 + $0x28] sm:$0xff] %v235
    %252 = vst [vmem:[#allocation2 + $0x30] sm:$0xff] %v236
    %253 = vst [vmem:[#allocation2 + $0x38] sm:$0xff] %v237
    %254 = vst [vmem:[#allocation2 + $0x40] sm:$0xff] %v238
    %255 = vst [vmem:[#allocation2 + $0x48] sm:$0xff] %v239
    %256 = vst [vmem:[#allocation2 + $0x50] sm:$0xff] %v240
    %257 = vst [vmem:[#allocation2 + $0x58] sm:$0xff] %v241
    %258 = vst [vmem:[#allocation2 + $0x60] sm:$0xff] %v242
    %259 = vst [vmem:[#allocation2 + $0x68] sm:$0xff] %v243
    %260 = vst [vmem:[#allocation2 + $0x70] sm:$0xff] %v244
    %261 = vst [vmem:[#allocation2 + $0x78] sm:$0xff] %v245
    %s262 = smul.u32 0, 128
    %s263 = sadd.s32 0, 1
    %s264 = smul.u32 %s263, 128
    %p265 = scmp.lt.s32.totalorder %s262, %s264
    %s266 = smul.u32 0, 128
    %s267 = sadd.s32 0, 1
    %s268 = smul.u32 %s267, 128
    %p269 = scmp.lt.s32.totalorder %s266, %s268
    %p270 = pnand %p265, %p269
    %p271 = pneg %p270
    // Predicated region
    $region26: #{tpu_custom_call.1} parent=1 // pred_check
      _
    $region27: #{tpu_custom_call.1} parent=1 // pred_check_branch
      %273 = sbr.rel (%p270) target = $region29
    $region28: #{tpu_custom_call.1} parent=1 // pred_region
      %v274 = vlaneseq
      %v275 = vshrl.u32 %v274, 7
      %v276 = vadd.s32 %v275, 8
      %v277 = vadd.s32 %v275, 16
      %v278 = vadd.s32 %v275, 24
      %v279 = vadd.s32 %v275, 32
      %v280 = vadd.s32 %v275, 40
      %v281 = vadd.s32 %v275, 48
      %v282 = vadd.s32 %v275, 56
      %v283 = vadd.s32 %v275, 64
      %v284 = vadd.s32 %v275, 72
      %v285 = vadd.s32 %v275, 80
      %v286 = vadd.s32 %v275, 88
      %v287 = vadd.s32 %v275, 96
      %v288 = vadd.s32 %v275, 104
      %v289 = vadd.s32 %v275, 112
      %v290 = vadd.s32 %v275, 120
      %v291 = vstv %s262
      %v292 = vadd.s32 %v291, %v275
      %v293 = vadd.s32 %v291, %v276
      %v294 = vadd.s32 %v291, %v277
      %v295 = vadd.s32 %v291, %v278
      %v296 = vadd.s32 %v291, %v279
      %v297 = vadd.s32 %v291, %v280
      %v298 = vadd.s32 %v291, %v281
      %v299 = vadd.s32 %v291, %v282
      %v300 = vadd.s32 %v291, %v283
      %v301 = vadd.s32 %v291, %v284
      %v302 = vadd.s32 %v291, %v285
      %v303 = vadd.s32 %v291, %v286
      %v304 = vadd.s32 %v291, %v287
      %v305 = vadd.s32 %v291, %v288
      %v306 = vadd.s32 %v291, %v289
      %v307 = vadd.s32 %v291, %v290
      %v308 = vlaneseq
      %v309 = vand.u32 %v308, 127
      %v310 = vstv %s266
      %v311 = vadd.s32 %v310, %v309
      %vm312 = vcmp.eq.s32.totalorder %v292, %v311
      %vm313 = vcmp.eq.s32.totalorder %v293, %v311
      %vm314 = vcmp.eq.s32.totalorder %v294, %v311
      %vm315 = vcmp.eq.s32.totalorder %v295, %v311
      %vm316 = vcmp.eq.s32.totalorder %v296, %v311
      %vm317 = vcmp.eq.s32.totalorder %v297, %v311
      %vm318 = vcmp.eq.s32.totalorder %v298, %v311
      %vm319 = vcmp.eq.s32.totalorder %v299, %v311
      %vm320 = vcmp.eq.s32.totalorder %v300, %v311
      %vm321 = vcmp.eq.s32.totalorder %v301, %v311
      %vm322 = vcmp.eq.s32.totalorder %v302, %v311
      %vm323 = vcmp.eq.s32.totalorder %v303, %v311
      %vm324 = vcmp.eq.s32.totalorder %v304, %v311
      %vm325 = vcmp.eq.s32.totalorder %v305, %v311
      %vm326 = vcmp.eq.s32.totalorder %v306, %v311
      %vm327 = vcmp.eq.s32.totalorder %v307, %v311
      %v328 = vsel %vm312, %v183, 0.0
      %v329 = vsel %vm313, %v185, 0.0
      %v330 = vsel %vm314, %v187, 0.0
      %v331 = vsel %vm315, %v189, 0.0
      %v332 = vsel %vm316, %v191, 0.0
      %v333 = vsel %vm317, %v193, 0.0
      %v334 = vsel %vm318, %v195, 0.0
      %v335 = vsel %vm319, %v197, 0.0
      %v336 = vsel %vm320, %v199, 0.0
      %v337 = vsel %vm321, %v201, 0.0
      %v338 = vsel %vm322, %v203, 0.0
      %v339 = vsel %vm323, %v205, 0.0
      %v340 = vsel %vm324, %v207, 0.0
      %v341 = vsel %vm325, %v209, 0.0
      %v342 = vsel %vm326, %v211, 0.0
      %v343 = vsel %vm327, %v213, 0.0
      %v344 = vld [vmem:[#allocation2] sm:$0xff]
      %v345 = vld [vmem:[#allocation2 + $0x8] sm:$0xff]
      %v346 = vld [vmem:[#allocation2 + $0x10] sm:$0xff]
      %v347 = vld [vmem:[#allocation2 + $0x18] sm:$0xff]
      %v348 = vld [vmem:[#allocation2 + $0x20] sm:$0xff]
      %v349 = vld [vmem:[#allocation2 + $0x28] sm:$0xff]
      %v350 = vld [vmem:[#allocation2 + $0x30] sm:$0xff]
      %v351 = vld [vmem:[#allocation2 + $0x38] sm:$0xff]
      %v352 = vld [vmem:[#allocation2 + $0x40] sm:$0xff]
      %v353 = vld [vmem:[#allocation2 + $0x48] sm:$0xff]
      %v354 = vld [vmem:[#allocation2 + $0x50] sm:$0xff]
      %v355 = vld [vmem:[#allocation2 + $0x58] sm:$0xff]
      %v356 = vld [vmem:[#allocation2 + $0x60] sm:$0xff]
      %v357 = vld [vmem:[#allocation2 + $0x68] sm:$0xff]
      %v358 = vld [vmem:[#allocation2 + $0x70] sm:$0xff]
      %v359 = vld [vmem:[#allocation2 + $0x78] sm:$0xff]
      %v360 = vsub.f32 %v344, %v328
      %v361 = vsub.f32 %v345, %v329
      %v362 = vsub.f32 %v346, %v330
      %v363 = vsub.f32 %v347, %v331
      %v364 = vsub.f32 %v348, %v332
      %v365 = vsub.f32 %v349, %v333
      %v366 = vsub.f32 %v350, %v334
      %v367 = vsub.f32 %v351, %v335
      %v368 = vsub.f32 %v352, %v336
      %v369 = vsub.f32 %v353, %v337
      %v370 = vsub.f32 %v354, %v338
      %v371 = vsub.f32 %v355, %v339
      %v372 = vsub.f32 %v356, %v340
      %v373 = vsub.f32 %v357, %v341
      %v374 = vsub.f32 %v358, %v342
      %v375 = vsub.f32 %v359, %v343
      %376 = vst [vmem:[#allocation2] sm:$0xff] %v360
      %377 = vst [vmem:[#allocation2 + $0x8] sm:$0xff] %v361
      %378 = vst [vmem:[#allocation2 + $0x10] sm:$0xff] %v362
      %379 = vst [vmem:[#allocation2 + $0x18] sm:$0xff] %v363
      %380 = vst [vmem:[#allocation2 + $0x20] sm:$0xff] %v364
      %381 = vst [vmem:[#allocation2 + $0x28] sm:$0xff] %v365
      %382 = vst [vmem:[#allocation2 + $0x30] sm:$0xff] %v366
      %383 = vst [vmem:[#allocation2 + $0x38] sm:$0xff] %v367
      %384 = vst [vmem:[#allocation2 + $0x40] sm:$0xff] %v368
      %385 = vst [vmem:[#allocation2 + $0x48] sm:$0xff] %v369
      %386 = vst [vmem:[#allocation2 + $0x50] sm:$0xff] %v370
      %387 = vst [vmem:[#allocation2 + $0x58] sm:$0xff] %v371
      %388 = vst [vmem:[#allocation2 + $0x60] sm:$0xff] %v372
      %389 = vst [vmem:[#allocation2 + $0x68] sm:$0xff] %v373
      %390 = vst [vmem:[#allocation2 + $0x70] sm:$0xff] %v374
      %391 = vst [vmem:[#allocation2 + $0x78] sm:$0xff] %v375
    $region29: #{tpu_custom_call.1} parent=1 // pred_fallthru
      _
    %p392 = scmp.gt.s32.totalorder %s264, 16
    // Predicated region
    $region30: #{tpu_custom_call.1} parent=1 // pred_check
      %p393 = pneg %p392
    $region31: #{tpu_custom_call.1} parent=1 // pred_check_branch
      %395 = sbr.rel (%p393) target = $region33
    $region32: #{tpu_custom_call.1} parent=1 // pred_region
      %v396 = vlaneseq
      %v397 = vand.u32 %v396, 127
      %v398 = vstv %s266
      %v399 = vadd.s32 %v398, %v397
      %vm400 = vcmp.ge.s32.totalorder %v399, 16
      %v401 = vsel %vm400, %v183, 0.0
      %v402 = vsel %vm400, %v185, 0.0
      %v403 = vsel %vm400, %v187, 0.0
      %v404 = vsel %vm400, %v189, 0.0
      %v405 = vsel %vm400, %v191, 0.0
      %v406 = vsel %vm400, %v193, 0.0
      %v407 = vsel %vm400, %v195, 0.0
      %v408 = vsel %vm400, %v197, 0.0
      %v409 = vsel %vm400, %v199, 0.0
      %v410 = vsel %vm400, %v201, 0.0
      %v411 = vsel %vm400, %v203, 0.0
      %v412 = vsel %vm400, %v205, 0.0
      %v413 = vsel %vm400, %v207, 0.0
      %v414 = vsel %vm400, %v209, 0.0
      %v415 = vsel %vm400, %v211, 0.0
      %v416 = vsel %vm400, %v213, 0.0
      %v417 = vld [vmem:[#allocation2] sm:$0xff]
      %v418 = vld [vmem:[#allocation2 + $0x8] sm:$0xff]
      %v419 = vld [vmem:[#allocation2 + $0x10] sm:$0xff]
      %v420 = vld [vmem:[#allocation2 + $0x18] sm:$0xff]
      %v421 = vld [vmem:[#allocation2 + $0x20] sm:$0xff]
      %v422 = vld [vmem:[#allocation2 + $0x28] sm:$0xff]
      %v423 = vld [vmem:[#allocation2 + $0x30] sm:$0xff]
      %v424 = vld [vmem:[#allocation2 + $0x38] sm:$0xff]
      %v425 = vld [vmem:[#allocation2 + $0x40] sm:$0xff]
      %v426 = vld [vmem:[#allocation2 + $0x48] sm:$0xff]
      %v427 = vld [vmem:[#allocation2 + $0x50] sm:$0xff]
      %v428 = vld [vmem:[#allocation2 + $0x58] sm:$0xff]
      %v429 = vld [vmem:[#allocation2 + $0x60] sm:$0xff]
      %v430 = vld [vmem:[#allocation2 + $0x68] sm:$0xff]
      %v431 = vld [vmem:[#allocation2 + $0x70] sm:$0xff]
      %v432 = vld [vmem:[#allocation2 + $0x78] sm:$0xff]
      %v433 = vsub.f32 %v417, %v401
      %v434 = vsub.f32 %v418, %v402
      %v435 = vsub.f32 %v419, %v403
      %v436 = vsub.f32 %v420, %v404
      %v437 = vsub.f32 %v421, %v405
      %v438 = vsub.f32 %v422, %v406
      %v439 = vsub.f32 %v423, %v407
      %v440 = vsub.f32 %v424, %v408
      %v441 = vsub.f32 %v425, %v409
      %v442 = vsub.f32 %v426, %v410
      %v443 = vsub.f32 %v427, %v411
      %v444 = vsub.f32 %v428, %v412
      %v445 = vsub.f32 %v429, %v413
      %v446 = vsub.f32 %v430, %v414
      %v447 = vsub.f32 %v431, %v415
      %v448 = vsub.f32 %v432, %v416
      %449 = vst [vmem:[#allocation2] sm:$0xff] %v433
      %450 = vst [vmem:[#allocation2 + $0x8] sm:$0xff] %v434
      %451 = vst [vmem:[#allocation2 + $0x10] sm:$0xff] %v435
      %452 = vst [vmem:[#allocation2 + $0x18] sm:$0xff] %v436
      %453 = vst [vmem:[#allocation2 + $0x20] sm:$0xff] %v437
      %454 = vst [vmem:[#allocation2 + $0x28] sm:$0xff] %v438
      %455 = vst [vmem:[#allocation2 + $0x30] sm:$0xff] %v439
      %456 = vst [vmem:[#allocation2 + $0x38] sm:$0xff] %v440
      %457 = vst [vmem:[#allocation2 + $0x40] sm:$0xff] %v441
      %458 = vst [vmem:[#allocation2 + $0x48] sm:$0xff] %v442
      %459 = vst [vmem:[#allocation2 + $0x50] sm:$0xff] %v443
      %460 = vst [vmem:[#allocation2 + $0x58] sm:$0xff] %v444
      %461 = vst [vmem:[#allocation2 + $0x60] sm:$0xff] %v445
      %462 = vst [vmem:[#allocation2 + $0x68] sm:$0xff] %v446
      %463 = vst [vmem:[#allocation2 + $0x70] sm:$0xff] %v447
      %464 = vst [vmem:[#allocation2 + $0x78] sm:$0xff] %v448
    $region33: #{tpu_custom_call.1} parent=1 // pred_fallthru
      _
    // Predicated region
    $region34: #{tpu_custom_call.1} parent=1 // pred_check
      %p465 = pneg %p47
    $region35: #{tpu_custom_call.1} parent=1 // pred_check_branch
      %467 = sbr.rel (%p465) target = $region37
    $region36: #{tpu_custom_call.1} parent=1 // pred_region
      %v468 = vld [vmem:[#allocation2] sm:$0xff]
      %v469 = vld [vmem:[#allocation2 + $0x8] sm:$0xff]
      %v470 = vld [vmem:[#allocation2 + $0x10] sm:$0xff]
      %v471 = vld [vmem:[#allocation2 + $0x18] sm:$0xff]
      %v472 = vld [vmem:[#allocation2 + $0x20] sm:$0xff]
      %v473 = vld [vmem:[#allocation2 + $0x28] sm:$0xff]
      %v474 = vld [vmem:[#allocation2 + $0x30] sm:$0xff]
      %v475 = vld [vmem:[#allocation2 + $0x38] sm:$0xff]
      %v476 = vld [vmem:[#allocation2 + $0x40] sm:$0xff]
      %v477 = vld [vmem:[#allocation2 + $0x48] sm:$0xff]
      %v478 = vld [vmem:[#allocation2 + $0x50] sm:$0xff]
      %v479 = vld [vmem:[#allocation2 + $0x58] sm:$0xff]
      %v480 = vld [vmem:[#allocation2 + $0x60] sm:$0xff]
      %v481 = vld [vmem:[#allocation2 + $0x68] sm:$0xff]
      %v482 = vld [vmem:[#allocation2 + $0x70] sm:$0xff]
      %v483 = vld [vmem:[#allocation2 + $0x78] sm:$0xff]
      %484 = vadd.xlane.f32.xlu0 %v468
      %v485 = vpop.xlane.xlu0 %484
      %486 = vadd.xlane.f32.xlu0 %v469
      %v487 = vpop.xlane.xlu0 %486
      %488 = vadd.xlane.f32.xlu0 %v470
      %v489 = vpop.xlane.xlu0 %488
      %490 = vadd.xlane.f32.xlu0 %v471
      %v491 = vpop.xlane.xlu0 %490
      %492 = vadd.xlane.f32.xlu0 %v472
      %v493 = vpop.xlane.xlu0 %492
      %494 = vadd.xlane.f32.xlu0 %v473
      %v495 = vpop.xlane.xlu0 %494
      %496 = vadd.xlane.f32.xlu0 %v474
      %v497 = vpop.xlane.xlu0 %496
      %498 = vadd.xlane.f32.xlu0 %v475
      %v499 = vpop.xlane.xlu0 %498
      %500 = vadd.xlane.f32.xlu0 %v476
      %v501 = vpop.xlane.xlu0 %500
      %502 = vadd.xlane.f32.xlu0 %v477
      %v503 = vpop.xlane.xlu0 %502
      %504 = vadd.xlane.f32.xlu0 %v478
      %v505 = vpop.xlane.xlu0 %504
      %506 = vadd.xlane.f32.xlu0 %v479
      %v507 = vpop.xlane.xlu0 %506
      %508 = vadd.xlane.f32.xlu0 %v480
      %v509 = vpop.xlane.xlu0 %508
      %510 = vadd.xlane.f32.xlu0 %v481
      %v511 = vpop.xlane.xlu0 %510
      %512 = vadd.xlane.f32.xlu0 %v482
      %v513 = vpop.xlane.xlu0 %512
      %514 = vadd.xlane.f32.xlu0 %v483
      %v515 = vpop.xlane.xlu0 %514
      %v516 = vlog2.pop %v485
      %v517 = vmul.f32 %v516, 0.6931472
      %v518 = vlog2.pop %v487
      %v519 = vmul.f32 %v518, 0.6931472
      %v520 = vlog2.pop %v489
      %v521 = vmul.f32 %v520, 0.6931472
      %v522 = vlog2.pop %v491
      %v523 = vmul.f32 %v522, 0.6931472
      %v524 = vlog2.pop %v493
      %v525 = vmul.f32 %v524, 0.6931472
      %v526 = vlog2.pop %v495
      %v527 = vmul.f32 %v526, 0.6931472
      %v528 = vlog2.pop %v497
      %v529 = vmul.f32 %v528, 0.6931472
      %v530 = vlog2.pop %v499
      %v531 = vmul.f32 %v530, 0.6931472
      %v532 = vlog2.pop %v501
      %v533 = vmul.f32 %v532, 0.6931472
      %v534 = vlog2.pop %v503
      %v535 = vmul.f32 %v534, 0.6931472
      %v536 = vlog2.pop %v505
      %v537 = vmul.f32 %v536, 0.6931472
      %v538 = vlog2.pop %v507
      %v539 = vmul.f32 %v538, 0.6931472
      %v540 = vlog2.pop %v509
      %v541 = vmul.f32 %v540, 0.6931472
      %v542 = vlog2.pop %v511
      %v543 = vmul.f32 %v542, 0.6931472
      %v544 = vlog2.pop %v513
      %v545 = vmul.f32 %v544, 0.6931472
      %v546 = vlog2.pop %v515
      %v547 = vmul.f32 %v546, 0.6931472
      %v548 = vadd.f32 %v517, %v165
      %v549 = vadd.f32 %v519, %v165
      %v550 = vadd.f32 %v521, %v165
      %v551 = vadd.f32 %v523, %v165
      %v552 = vadd.f32 %v525, %v165
      %v553 = vadd.f32 %v527, %v165
      %v554 = vadd.f32 %v529, %v165
      %v555 = vadd.f32 %v531, %v165
      %v556 = vadd.f32 %v533, %v165
      %v557 = vadd.f32 %v535, %v165
      %v558 = vadd.f32 %v537, %v165
      %v559 = vadd.f32 %v539, %v165
      %v560 = vadd.f32 %v541, %v165
      %v561 = vadd.f32 %v543, %v165
      %v562 = vadd.f32 %v545, %v165
      %v563 = vadd.f32 %v547, %v165
      %vm564 = vcmask 7168
      %565 = vst.msk [vmem:[%s3] sm:$0xff] %vm564, %v548
      %566 = vst.msk [vmem:[%s3 + $0x8] sm:$0xff] %vm564, %v549
      %567 = vst.msk [vmem:[%s3 + $0x10] sm:$0xff] %vm564, %v550
      %568 = vst.msk [vmem:[%s3 + $0x18] sm:$0xff] %vm564, %v551
      %569 = vst.msk [vmem:[%s3 + $0x20] sm:$0xff] %vm564, %v552
      %570 = vst.msk [vmem:[%s3 + $0x28] sm:$0xff] %vm564, %v553
      %571 = vst.msk [vmem:[%s3 + $0x30] sm:$0xff] %vm564, %v554
      %572 = vst.msk [vmem:[%s3 + $0x38] sm:$0xff] %vm564, %v555
      %573 = vst.msk [vmem:[%s3 + $0x40] sm:$0xff] %vm564, %v556
      %574 = vst.msk [vmem:[%s3 + $0x48] sm:$0xff] %vm564, %v557
      %575 = vst.msk [vmem:[%s3 + $0x50] sm:$0xff] %vm564, %v558
      %576 = vst.msk [vmem:[%s3 + $0x58] sm:$0xff] %vm564, %v559
      %577 = vst.msk [vmem:[%s3 + $0x60] sm:$0xff] %vm564, %v560
      %578 = vst.msk [vmem:[%s3 + $0x68] sm:$0xff] %vm564, %v561
      %579 = vst.msk [vmem:[%s3 + $0x70] sm:$0xff] %vm564, %v562
      %580 = vst.msk [vmem:[%s3 + $0x78] sm:$0xff] %vm564, %v563
    $region37: #{tpu_custom_call.1} parent=1 // pred_fallthru
      _
    // Predicated region
    $region38: #{tpu_custom_call.1} parent=1 // pred_check
      _
    $region39: #{tpu_custom_call.1} parent=1 // pred_check_branch
      %582 = sbr.rel (0) target = $region41
    $region40: #{tpu_custom_call.1} parent=1 // pred_region
      _
    $region41: #{tpu_custom_call.1} parent=1 // pred_fallthru
      _
    // Predicated region
    $region42: #{tpu_custom_call.1} parent=1 // pred_check
      _
    $region43: #{tpu_custom_call.1} parent=1 // pred_check_branch
      %584 = sbr.rel (0) target = $region45
    $region44: #{tpu_custom_call.1} parent=1 // pred_region
      _
    $region45: #{tpu_custom_call.1} parent=1 // pred_fallthru
      _
    %585 = vsyncpa [#allocation5], 1
    %586 = vsyncpa [#allocation7], 1

</llo_original>
